<compile_context>
chip_gen: v6e
topology: v6e:2x2x1
jax: 0.10.0
libtpu: 0.0.40
codegen_flags: <defaults>
</compile_context>

<pallas_src>
import numpy as np
import jax
import jax.numpy as jnp
from jax.experimental import pallas as pl
from jax.experimental.pallas import tpu as pltpu

EPS = 1e-6


def _round_up(x, m):
    return ((x + m - 1) // m) * m


def _vmem_capacity_bytes():
    """Physical VMEM per core (v5e/v6e: 128 MiB, v7x: 64 MiB)."""
    try:
        return int(pltpu.get_tpu_info().vmem_capacity_bytes)
    except Exception:
        pass
    try:
        kind = jax.devices()[0].device_kind.lower()
        if "v7" in kind or "7x" in kind:
            return 64 * 1024 * 1024
    except Exception:
        pass
    return 128 * 1024 * 1024


def _layernorm(x, g, b):
    mu = jnp.mean(x, axis=-1, keepdims=True)
    var = jnp.mean((x - mu) ** 2, axis=-1, keepdims=True)
    return (x - mu) * jax.lax.rsqrt(var + EPS) * g + b


# ---------------------------------------------------------------------------
# Kernel A: merged (pre_mix Linear | pos_weight Linear) matmul + LayerNorm +
#           sin/cos modulation -> packed [fcos | fsin] slab (== st.F)
# ---------------------------------------------------------------------------
def _premix_kernel(xz_ref, w_ref, ln1_ref, stf_ref):
    inc = stf_ref.shape[-1] // 2
    # One block-diagonal matmul: [x | coords] @ [[w_pre, 0], [0, w_pos_tiled]].
    yp = jnp.dot(xz_ref[...], w_ref[...], preferred_element_type=jnp.float32)
    f_in = _layernorm(yp[:, :inc], ln1_ref[0:1, :], ln1_ref[1:2, :])
    pos = yp[:, inc:]
    # Single lane-packed full-width store.  At inc=32 direct half writes would be
    # masked vst.msk plus a 32-lane shift anyway; with inc>=128 switch to
    # stf_ref[:, :inc] = fcos; stf_ref[:, inc:] = fsin (review suggestion).
    stf_ref[...] = jnp.concatenate([f_in * jnp.cos(pos), f_in * jnp.sin(pos)], axis=-1)


def premix_pos(xz, wbig, ln1, tn, vmem_limit):
    npad, kin = xz.shape
    inc2 = wbig.shape[1]
    row = lambda i: (i, 0)
    full = lambda i: (0, 0)
    return pl.pallas_call(
        _premix_kernel,
        out_shape=jax.ShapeDtypeStruct((npad, inc2), jnp.float32),
        grid=(npad // tn,),
        in_specs=[
            pl.BlockSpec((tn, kin), row),
            pl.BlockSpec((kin, inc2), full),
            pl.BlockSpec((2, inc2 // 2), full),   # packed [gamma; beta]
        ],
        out_specs=pl.BlockSpec((tn, inc2), row),
        compiler_params=pltpu.CompilerParams(
            dimension_semantics=("parallel",),
            vmem_limit_bytes=vmem_limit),
    )(xz, wbig, ln1)


# ---------------------------------------------------------------------------
# Kernel B (fused): devoxelize gather + ELK recombine + 27-neighbour conv
#                   (in-kernel gathers from VMEM-resident tables) + LayerNorms
#                   + ReLU
# ---------------------------------------------------------------------------
def _fused_tail_kernel(ind_ref, cpad_ref, wpos_ref, nf_ref, xtbl_ref, wconv_ref,
                       ln_ref, out_ref):
    inc = out_ref.shape[-1]
    ind = ind_ref[...]                                   # (tn, 28) int32
    # position encoding recomputed in-kernel (no cos/sin HBM round trip)
    pos = jnp.dot(cpad_ref[...], wpos_ref[...], preferred_element_type=jnp.float32)
    cosw = jnp.cos(pos)
    sinw = jnp.sin(pos)
    # devoxelize gather fused: coarse-voxel feature table is VMEM-resident (M << N)
    lf = jnp.take(nf_ref[...], ind[:, 27], axis=0, mode="clip")
    new_f = lf[:, :inc] * cosw + lf[:, inc:] * sinw
    new_f = _layernorm(new_f, ln_ref[0:1, :], ln_ref[1:2, :])
    # local_mix 3x3x3 sparse conv fused: per-offset row gather from the
    # VMEM-resident bf16 feature table, 27 small bf16 matmuls, f32 accumulate.
    xtbl = xtbl_ref[...]
    wconv = wconv_ref[...]
    acc = jnp.zeros((ind.shape[0], inc), jnp.float32)
    for k in range(27):
        gk = jnp.take(xtbl, ind[:, k], axis=0, mode="clip")
        acc = acc + jnp.dot(gk, wconv[k], preferred_element_type=jnp.float32)
    local = _layernorm(acc, ln_ref[2:3, :], ln_ref[3:4, :])
    out_ref[...] = jnp.maximum(new_f + local, 0.0)        # ReLU


def recombine_fused(ind, cpad, wpos, nf, xtbl, wconv, ln_pack, tn, vmem_limit):
    npad = ind.shape[0]
    inc = wconv.shape[-1]
    ntbl = xtbl.shape[0]
    mpad = nf.shape[0]
    row = lambda i: (i, 0)
    full = lambda i: (0, 0)
    full3 = lambda i: (0, 0, 0)
    return pl.pallas_call(
        _fused_tail_kernel,
        out_shape=jax.ShapeDtypeStruct((npad, inc), jnp.float32),
        grid=(npad // tn,),
        in_specs=[
            pl.BlockSpec((tn, 28), row),            # 27 neighbour ids + coarse idx
            pl.BlockSpec((tn, 8), row),             # padded coords
            pl.BlockSpec((8, inc), full),           # pos weight (padded K=8)
            pl.BlockSpec((mpad, 2 * inc), full),    # VMEM-resident coarse features
            pl.BlockSpec((ntbl, inc), full),        # VMEM-resident bf16 feature tbl
            pl.BlockSpec((27, inc, inc), full3),    # conv weights (offset-major)
            pl.BlockSpec((4, inc), full),           # packed [g2; b2; g3; b3]
        ],
        out_specs=pl.BlockSpec((tn, inc), row),
        compiler_params=pltpu.CompilerParams(
            dimension_semantics=("parallel",),
            vmem_limit_bytes=vmem_limit),
    )(ind, cpad, wpos, nf, xtbl, wconv, ln_pack)


# ---------------------------------------------------------------------------
# Kernel B (fallback): same math but fed by XLA gathers ([Npad, 27*inc] bf16 slab
# and pre-gathered large_f).  Used only if the in-kernel gather fails to lower or
# the resident tables exceed the VMEM budget (e.g. very large N on v7x).
# ---------------------------------------------------------------------------
def _slab_tail_kernel(lf_ref, cpad_ref, wpos_ref, g_ref, wc_ref, ln_ref, out_ref):
    inc = out_ref.shape[-1]
    pos = jnp.dot(cpad_ref[...], wpos_ref[...], preferred_element_type=jnp.float32)
    lf = lf_ref[...]
    new_f = lf[:, :inc] * jnp.cos(pos) + lf[:, inc:] * jnp.sin(pos)
    new_f = _layernorm(new_f, ln_ref[0:1, :], ln_ref[1:2, :])
    local = jnp.dot(g_ref[...], wc_ref[...], preferred_element_type=jnp.float32)
    local = _layernorm(local, ln_ref[2:3, :], ln_ref[3:4, :])
    out_ref[...] = jnp.maximum(new_f + local, 0.0)


def recombine_slab(large_f, cpad, wpos, g, wconv_flat, ln_pack, tn, vmem_limit):
    npad, inc2 = large_f.shape
    inc = inc2 // 2
    k27 = g.shape[1]
    row = lambda i: (i, 0)
    full = lambda i: (0, 0)
    return pl.pallas_call(
        _slab_tail_kernel,
        out_shape=jax.ShapeDtypeStruct((npad, inc), jnp.float32),
        grid=(npad // tn,),
        in_specs=[
            pl.BlockSpec((tn, inc2), row),
            pl.BlockSpec((tn, 8), row),
            pl.BlockSpec((8, inc), full),
            pl.BlockSpec((tn, k27), row),           # bf16 neighbour slab
            pl.BlockSpec((k27, inc), full),         # bf16 conv weights
            pl.BlockSpec((4, inc), full),
        ],
        out_specs=pl.BlockSpec((tn, inc), row),
        compiler_params=pltpu.CompilerParams(
            dimension_semantics=("parallel",),
            vmem_limit_bytes=vmem_limit),
    )(large_f, cpad, wpos, g, wconv_flat, ln_pack)


# ---------------------------------------------------------------------------
# Host-side sparse index structure (replaces sphash / sphashquery / kmaps)
# ---------------------------------------------------------------------------
def build_neighbor_table(coords, spatial, batch):
    """coords: np int [M, 4] (x, y, z, b). Returns [M, 27] neighbour row index for
    all 3x3x3 offsets, -1 if absent.  NOTE: the dx-major offset enumeration must
    match how w_conv is laid out as [27*inc, inc] (consistent within this script)."""
    m = coords.shape[0]
    grid = -np.ones((batch,) + tuple(spatial), dtype=np.int64)
    grid[coords[:, 3], coords[:, 0], coords[:, 1], coords[:, 2]] = np.arange(m)
    offs = np.array([(dx, dy, dz)
                     for dx in (-1, 0, 1) for dy in (-1, 0, 1) for dz in (-1, 0, 1)],
                    dtype=np.int64)
    sp = np.array(spatial, dtype=np.int64)
    nbr = np.full((m, 27), -1, dtype=np.int64)
    for k, off in enumerate(offs):
        q = coords[:, :3] + off
        valid = np.all((q >= 0) & (q < sp), axis=1)
        qc = np.clip(q, 0, sp - 1)
        hit = grid[coords[:, 3], qc[:, 0], qc[:, 1], qc[:, 2]]
        nbr[:, k] = np.where(valid, hit, -1)
    return nbr


# ---------------------------------------------------------------------------
# Full TSELKBlock forward (baseop='cos')
# ---------------------------------------------------------------------------
def ts_elk_block_forward(feats, coords_np, stride, params, spatial, batch):
    n, inc = feats.shape

    # Tile policy (review): cap at 256 rows, guarantee >= 8 grid steps where
    # possible (steady-state double-buffering, >= 4 steps per TensorCore on v7x).
    tn = max(8, min(256, _round_up(-(-n // 8), 8)))
    npad = _round_up(n, tn)
    pad = npad - n

    phys_vmem = _vmem_capacity_bytes()
    vmem_small = int(min(32 * 1024 * 1024, (phys_vmem * 3) // 4))

    x = jnp.pad(feats, ((0, pad), (0, 0)))                       # [Npad, inc]
    cpad_np = np.zeros((npad, 8), np.float32)
    cpad_np[:n, :3] = coords_np[:, :3].astype(np.float32)
    cpad = jnp.asarray(cpad_np)                                  # [Npad, 8]

    # ----- kernel A: merged pre_mix / pos_weight matmul + LN + cos/sin ------
    xz = jnp.concatenate([x, cpad], axis=1)                      # [Npad, inc+8]
    wbig = jnp.zeros((inc + 8, 2 * inc), jnp.float32)
    wbig = wbig.at[:inc, :inc].set(params["w_pre"])
    wbig = wbig.at[inc:inc + 3, inc:].set(params["w_pos_tiled"])
    st_f = premix_pos(xz, wbig, params["ln1"], tn, vmem_small)   # [Npad, 2*inc]

    # ----- large_to_small: coarse voxel average pooling (spvoxelize) --------
    cc = np.concatenate([coords_np[:, :3] // stride, coords_np[:, 3:]], axis=1)
    small_c, idx = np.unique(cc, axis=0, return_inverse=True)
    idx = np.asarray(idx).reshape(-1)
    m = small_c.shape[0]
    counts = np.bincount(idx, minlength=m).astype(np.float32)
    idx_j = jnp.asarray(idx.astype(np.int32))
    counts_j = jnp.asarray(counts)
    # TODO(synk): spvoxelize is a data-dependent scatter-add with no clean
    # dense-BlockSpec Pallas form; kept as an XLA segment_sum.
    small_f = jax.ops.segment_sum(st_f[:n], idx_j, num_segments=m) / counts_j[:, None]

    # ----- small_to_large_v2: count-weighted 3x3x3 neighbour mean over coarse
    # voxels (spdevoxelize with unit weights on the count-scaled features) ----
    sc_shape = tuple((s + stride - 1) // stride for s in spatial)
    nbr_s = build_neighbor_table(small_c, sc_shape, batch)       # [M, 27]
    f = jnp.concatenate([small_f, jnp.ones((m, 1), jnp.float32)], axis=1) * counts_j[:, None]
    f_ext = jnp.concatenate([f, jnp.zeros((1, f.shape[1]), jnp.float32)], axis=0)
    safe_s = jnp.asarray(np.where(nbr_s >= 0, nbr_s, m).astype(np.int32))
    summed = f_ext[safe_s].sum(axis=1)
    new_feat = summed[:, :-1] / summed[:, -1:]                   # [M, 2*inc]

    # ----- index table for the fused tail kernel ----------------------------
    # local_mix consumes the RAW input features x (in the reference, local_mix(st)
    # runs before st.F is replaced).
    nbr = build_neighbor_table(coords_np, spatial, batch)        # [N, 27]
    ind_np = np.zeros((npad, 28), np.int32)
    ind_np[:n, :27] = np.where(nbr >= 0, nbr, npad)              # rows >= npad are 0
    ind_np[n:, :27] = npad
    ind_np[:n, 27] = idx                                         # devoxelize index
    ind = jnp.asarray(ind_np)

    # bf16 feature table with 8 trailing zero rows (index `npad` reads zeros)
    xtbl = jnp.concatenate([x.astype(jnp.bfloat16),
                            jnp.zeros((8, inc), jnp.bfloat16)], axis=0)
    mpad = _round_up(m, 8)
    nf = jnp.pad(new_feat, ((0, mpad - m), (0, 0)))              # [Mpad, 2*inc] f32
    wconv = params["w_conv_bf16"].reshape(27, inc, inc)

    # VMEM budget check (review: v7x has 64 MiB physical; keep headroom)
    resident = 2 * (xtbl.size * 2 + nf.size * 4 + wconv.size * 2)
    per_tile = 2 * tn * (28 + 8 + inc + 2 * inc) * 4
    budget = (phys_vmem * 3) // 4
    fused_fits = (resident + per_tile + (8 << 20)) < budget
    vmem_fused = int(min(budget, max(32 << 20, resident + per_tile + (8 << 20))))

    out = None
    if fused_fits:
        try:
            out = recombine_fused(ind, cpad, params["w_pos_pad"], nf, xtbl, wconv,
                                  params["ln_pack"], tn, vmem_fused)
            out = jax.block_until_ready(out)
        except Exception:
            out = None
    if out is None:
        # TODO(synk): fallback path when the in-kernel sublane gather (jnp.take)
        # does not lower on this toolchain or the resident tables exceed the VMEM
        # budget: gathers are done by XLA and the tail kernel consumes the
        # [Npad, 27*inc] bf16 slab (previous, verified behaviour).
        large_f = jnp.pad(new_feat[idx_j], ((0, pad), (0, 0)))   # [Npad, 2*inc]
        g = xtbl[jnp.asarray(ind_np[:, :27])].reshape(npad, 27 * inc)
        out = recombine_slab(large_f, cpad, params["w_pos_pad"], g,
                             params["w_conv_bf16"], params["ln_pack"], tn, vmem_small)
        out = jax.block_until_ready(out)
    return out[:n]


if __name__ == "__main__":
    B, S, INC, N, STRIDE = 2, 16, 32, 128, 4
    spatial = (S, S, S)

    key = jax.random.PRNGKey(0)
    ks = jax.random.split(key, 8)

    # unique voxel coords per batch (x, y, z, b)
    per_b = N // B
    coord_chunks = []
    for b in range(B):
        perm = np.asarray(jax.random.permutation(ks[b], S * S * S))[:per_b]
        xx = perm // (S * S)
        yy = (perm // S) % S
        zz = perm % S
        coord_chunks.append(np.stack([xx, yy, zz, np.full(per_b, b)], axis=1))
    coords_np = np.concatenate(coord_chunks, axis=0).astype(np.int64)

    feats = jax.random.normal(ks[2], (N, INC), jnp.float32)

    def uinit(k, shape, fan_in):
        bound = 1.0 / np.sqrt(fan_in)
        return jax.random.uniform(k, shape, jnp.float32, -bound, bound)

    w_pre = uinit(ks[3], (INC, INC), INC)             # Linear(inc, inc, bias=False), [in, out]
    w_pos = uinit(ks[4], (3, INC), 3)                 # Linear(3, inc, bias=False), [in, out]
    w_pos_half = w_pos[:, : INC // 2]
    w_pos_tiled = jnp.concatenate([w_pos_half, w_pos_half], axis=1)      # fold .repeat([1,2])
    w_pos_pad = jnp.zeros((8, INC), jnp.float32).at[:3, :].set(w_pos_tiled)
    w_conv = uinit(ks[5], (27 * INC, INC), 27 * INC)  # spnn.Conv3d(inc, inc, 3), [27*in, out]

    params = dict(
        w_pre=w_pre,
        w_pos_tiled=w_pos_tiled,                      # (3, inc) for the merged matmul
        w_pos_pad=w_pos_pad,                          # (8, inc) for the tail kernel
        w_conv_bf16=w_conv.astype(jnp.bfloat16),
        ln1=jnp.concatenate([jnp.ones((1, INC), jnp.float32),
                             jnp.zeros((1, INC), jnp.float32)], axis=0),
        ln_pack=jnp.concatenate([jnp.ones((1, INC), jnp.float32),    # norm gamma
                                 jnp.zeros((1, INC), jnp.float32),   # norm beta
                                 jnp.ones((1, INC), jnp.float32),    # norm_local gamma
                                 jnp.zeros((1, INC), jnp.float32)],  # norm_local beta
                                axis=0),
    )

    out = ts_elk_block_forward(feats, coords_np, STRIDE, params, spatial, B)
    out = jax.block_until_ready(out)
    assert out.shape == (N, INC)
    assert bool(jnp.all(jnp.isfinite(out)))
    print("KERNEL_OK")
</pallas_src>

<mosaic_0001>
module attributes {stable_mosaic.version = 11 : i64} {
  func.func @_premix_kernel(%arg0: i32, %arg1: memref<16x40xf32, #tpu.memory_space<vmem>>, %arg2: memref<40x64xf32, #tpu.memory_space<vmem>>, %arg3: memref<2x32xf32, #tpu.memory_space<vmem>>, %arg4: memref<16x64xf32, #tpu.memory_space<vmem>>) attributes {dimension_semantics = [#tpu.dimension_semantics<parallel>], iteration_bounds = array<i64: 8>, scalar_prefetch = 0 : i64, scratch_operands = 0 : i64, tpu.core_type = #tpu.core_type<tc>, window_params = [{transform_indices = @transform_0, window_bounds = array<i64: 16, 40>}, {pipeline_mode = #tpu.pipeline_mode<synchronous>, transform_indices = @transform_1, window_bounds = array<i64: 40, 64>}, {pipeline_mode = #tpu.pipeline_mode<synchronous>, transform_indices = @transform_2, window_bounds = array<i64: 2, 32>}, {transform_indices = @transform_3, window_bounds = array<i64: 16, 64>}]} {
    %c0 = arith.constant 0 : index
    %c0_0 = arith.constant 0 : index
    %0 = vector.load %arg1[%c0, %c0_0] : memref<16x40xf32, #tpu.memory_space<vmem>>, vector<16x40xf32>
    %c0_1 = arith.constant 0 : index
    %c0_2 = arith.constant 0 : index
    %1 = vector.load %arg2[%c0_1, %c0_2] : memref<40x64xf32, #tpu.memory_space<vmem>>, vector<40x64xf32>
    %cst = arith.constant dense<0.000000e+00> : vector<16x64xf32>
    %2 = tpu.matmul %0, %1, %cst {dimension_numbers = #tpu.dot_dimension_numbers<[1], [0], [0], [1], [0, 0, 1, 1], [], []>} : vector<16x40xf32>, vector<40x64xf32>, vector<16x64xf32> -> vector<16x64xf32>
    %3 = vector.extract_strided_slice %2 {offsets = [0, 0], sizes = [16, 32], strides = [1, 1]} : vector<16x64xf32> to vector<16x32xf32>
    %c0_3 = arith.constant 0 : index
    %c0_4 = arith.constant 0 : index
    %4 = vector.load %arg3[%c0_3, %c0_4] : memref<2x32xf32, #tpu.memory_space<vmem>>, vector<1x32xf32>
    %c1 = arith.constant 1 : index
    %c0_5 = arith.constant 0 : index
    %5 = vector.load %arg3[%c1, %c0_5] : memref<2x32xf32, #tpu.memory_space<vmem>>, vector<1x32xf32>
    %cst_6 = arith.constant dense<0.000000e+00> : vector<16xf32>
    %6 = vector.multi_reduction <add>, %3, %cst_6 [1] : vector<16x32xf32> to vector<16xf32>
    %7 = vector.shape_cast %6 : vector<16xf32> to vector<16x1xf32>
    %cst_7 = arith.constant 3.200000e+01 : f32
    %8 = vector.broadcast %cst_7 : f32 to vector<16x1xf32>
    %9 = arith.divf %7, %8 : vector<16x1xf32>
    %10 = vector.broadcast %9 : vector<16x1xf32> to vector<16x32xf32>
    %11 = arith.subf %3, %10 : vector<16x32xf32>
    %12 = arith.mulf %11, %11 : vector<16x32xf32>
    %cst_8 = arith.constant dense<0.000000e+00> : vector<16xf32>
    %13 = vector.multi_reduction <add>, %12, %cst_8 [1] : vector<16x32xf32> to vector<16xf32>
    %14 = vector.shape_cast %13 : vector<16xf32> to vector<16x1xf32>
    %cst_9 = arith.constant 3.200000e+01 : f32
    %15 = vector.broadcast %cst_9 : f32 to vector<16x1xf32>
    %16 = arith.divf %14, %15 : vector<16x1xf32>
    %17 = vector.broadcast %9 : vector<16x1xf32> to vector<16x32xf32>
    %18 = arith.subf %3, %17 : vector<16x32xf32>
    %cst_10 = arith.constant 9.99999997E-7 : f32
    %19 = vector.broadcast %cst_10 : f32 to vector<16x1xf32>
    %20 = arith.addf %16, %19 : vector<16x1xf32>
    %21 = math.rsqrt %20 : vector<16x1xf32>
    %22 = vector.broadcast %21 : vector<16x1xf32> to vector<16x32xf32>
    %23 = arith.mulf %18, %22 : vector<16x32xf32>
    %24 = vector.broadcast %4 : vector<1x32xf32> to vector<16x32xf32>
    %25 = arith.mulf %23, %24 : vector<16x32xf32>
    %26 = vector.broadcast %5 : vector<1x32xf32> to vector<16x32xf32>
    %27 = arith.addf %25, %26 : vector<16x32xf32>
    %28 = vector.extract_strided_slice %2 {offsets = [0, 32], sizes = [16, 32], strides = [1, 1]} : vector<16x64xf32> to vector<16x32xf32>
    %29 = math.cos %28 : vector<16x32xf32>
    %30 = arith.mulf %27, %29 : vector<16x32xf32>
    %31 = math.sin %28 : vector<16x32xf32>
    %32 = arith.mulf %27, %31 : vector<16x32xf32>
    %33 = tpu.concatenate %30, %32 in 1 : vector<16x32xf32>, vector<16x32xf32> -> vector<16x64xf32>
    %c0_11 = arith.constant 0 : index
    %c0_12 = arith.constant 0 : index
    %34 = vector.load %arg4[%c0_11, %c0_12] : memref<16x64xf32, #tpu.memory_space<vmem>>, vector<16x64xf32>
    tpu.vector_store %arg4[%c0_11, %c0_12], %33 {strides = array<i32>} : memref<16x64xf32, #tpu.memory_space<vmem>>, vector<16x64xf32>,
    return
  }
  func.func @transform_0(%arg0: i32) -> (i32, i32) {
    %c0_i32 = arith.constant 0 : i32
    %c0_i32_0 = arith.constant 0 : i32
    return %arg0, %c0_i32 : i32, i32
  }
  func.func @transform_1(%arg0: i32) -> (i32, i32) {
    %c0_i32 = arith.constant 0 : i32
    %c0_i32_0 = arith.constant 0 : i32
    %c0_i32_1 = arith.constant 0 : i32
    return %c0_i32, %c0_i32_0 : i32, i32
  }
  func.func @transform_2(%arg0: i32) -> (i32, i32) {
    %c0_i32 = arith.constant 0 : i32
    %c0_i32_0 = arith.constant 0 : i32
    %c0_i32_1 = arith.constant 0 : i32
    return %c0_i32, %c0_i32_0 : i32, i32
  }
  func.func @transform_3(%arg0: i32) -> (i32, i32) {
    %c0_i32 = arith.constant 0 : i32
    %c0_i32_0 = arith.constant 0 : i32
    return %arg0, %c0_i32 : i32, i32
  }
}

</mosaic_0001>

<llo_original>
// kernel: tpu_custom_call.1
$region0: #{tpu_custom_call.1}
  #allocation0 [shape = 'u32[]', space=smem, size = 0x4, offset = 0x4, fixed_abs, tag = 'smem constant byte address 0x4 - core index']
  #allocation1 [shape = 'u32[144,128]{1,0:T(1,128)}', space=vmem, size = 0x12000, scoped, tag = 'internal scratch']
  %s0 = inlined_call_operand.vmem [shape: f32[128,40], index: 0, kind: input, shape index: {}]
  %s1 = inlined_call_operand.vmem [shape: f32[40,64], index: 1, kind: input, shape index: {}]
  %s2 = inlined_call_operand.vmem [shape: f32[2,32], index: 2, kind: input, shape index: {}]
  %s3 = inlined_call_operand.vmem [shape: f32[128,64], index: 3, kind: output, shape index: {}]
  %s4 = sld [smem:[#allocation0]]
  $region45: #{tpu_custom_call.1} parent=0
    _
  %s6 = ssub.s32 1, %s4
  %s7 = scalar_select 0, %s6, %s4
  loop: start=0, step=1, limit=10
  $region2: #{tpu_custom_call.1} parent=0 // loop_pre_header
    _
  $region3: #{tpu_custom_call.1} parent=0 // loop_header
    %s9 = sphi 0, %s13
    %p10 = scmp.ge.s32.totalorder %s9, 10
    %s19 = sphi 0, %s21
    %s22 = sphi 0, %s19
    %s23 = sphi 0, %s22
    %s39 = sphi 0, %s23
    %s43 = sphi 0, %s43
    %s45 = sphi 0, %s43
    %s46 = sphi 0, %s45
    %s60 = sphi 0, %s46
    %s64 = sphi 0, %s64
    %s66 = sphi 0, %s64
    %s67 = sphi 0, %s66
    %s81 = sphi 0, %s67
    %s87 = sphi 0, %s89
    %s90 = sphi 0, %s87
    %s91 = sphi 0, %s90
    %s107 = sphi 0, %s91
  $region4: #{tpu_custom_call.1} parent=0 // loop_header_branch
    %12 = sbr.rel (%p10) target = $region8
  $region5: #{tpu_custom_call.1} parent=0 // loop_body
    %s14 = ssub.s32 %s9, 1
    %s15 = ssub.s32 %s9, 2
    %s16 = sadd.s32 %s9, 1
    %s17 = ssub.s32 %s9, %s16
    %p18 = scmp.eq.s32.totalorder %s17, 0
    %s20 = sadd.s32 %s19, 1
    %s21 = scalar_select %p18, %s19, %s20
    %p24 = pneg %p18
    %p25 = scmp.eq.s32.totalorder %s9, 7
    %p26 = por %p24, %p25
    %p27 = scmp.ne.s32.totalorder %s19, %s22
    %p28 = scmp.eq.s32.totalorder %s9, 0
    %p29 = por %p27, %p28
    %p30 = scmp.ne.s32.totalorder %s19, %s22
    %p31 = scmp.eq.s32.totalorder %s14, 7
    %p32 = por %p30, %p31
    %p33 = scmp.ne.s32.totalorder %s22, %s23
    %p34 = scmp.eq.s32.totalorder %s14, 0
    %p35 = por %p33, %p34
    %p36 = scmp.ne.s32.totalorder %s22, %s23
    %p37 = scmp.eq.s32.totalorder %s15, 7
    %p38 = por %p36, %p37
    %p40 = scmp.ne.s32.totalorder %s23, %s39
    %p41 = scmp.eq.s32.totalorder %s15, 0
    %p42 = por %p40, %p41
    %s44 = sadd.s32 %s43, 1
    %p47 = scmp.eq.s32.totalorder %s9, 7
    %p48 = scmp.ne.s32.totalorder %s43, %s45
    %p49 = scmp.eq.s32.totalorder %s9, 0
    %p50 = por %p48, %p49
    %p51 = scmp.ne.s32.totalorder %s43, %s45
    %p52 = scmp.eq.s32.totalorder %s14, 7
    %p53 = por %p51, %p52
    %p54 = scmp.ne.s32.totalorder %s45, %s46
    %p55 = scmp.eq.s32.totalorder %s14, 0
    %p56 = por %p54, %p55
    %p57 = scmp.ne.s32.totalorder %s45, %s46
    %p58 = scmp.eq.s32.totalorder %s15, 7
    %p59 = por %p57, %p58
    %p61 = scmp.ne.s32.totalorder %s46, %s60
    %p62 = scmp.eq.s32.totalorder %s15, 0
    %p63 = por %p61, %p62
    %s65 = sadd.s32 %s64, 1
    %p68 = scmp.eq.s32.totalorder %s9, 7
    %p69 = scmp.ne.s32.totalorder %s64, %s66
    %p70 = scmp.eq.s32.totalorder %s9, 0
    %p71 = por %p69, %p70
    %p72 = scmp.ne.s32.totalorder %s64, %s66
    %p73 = scmp.eq.s32.totalorder %s14, 7
    %p74 = por %p72, %p73
    %p75 = scmp.ne.s32.totalorder %s66, %s67
    %p76 = scmp.eq.s32.totalorder %s14, 0
    %p77 = por %p75, %p76
    %p78 = scmp.ne.s32.totalorder %s66, %s67
    %p79 = scmp.eq.s32.totalorder %s15, 7
    %p80 = por %p78, %p79
    %p82 = scmp.ne.s32.totalorder %s67, %s81
    %p83 = scmp.eq.s32.totalorder %s15, 0
    %p84 = por %p82, %p83
    %s85 = ssub.s32 %s9, %s16
    %p86 = scmp.eq.s32.totalorder %s85, 0
    %s88 = sadd.s32 %s87, 1
    %s89 = scalar_select %p86, %s87, %s88
    %p92 = pneg %p86
    %p93 = scmp.eq.s32.totalorder %s9, 7
    %p94 = por %p92, %p93
    %p95 = scmp.ne.s32.totalorder %s87, %s90
    %p96 = scmp.eq.s32.totalorder %s9, 0
    %p97 = por %p95, %p96
    %p98 = scmp.ne.s32.totalorder %s87, %s90
    %p99 = scmp.eq.s32.totalorder %s14, 7
    %p100 = por %p98, %p99
    %p101 = scmp.ne.s32.totalorder %s90, %s91
    %p102 = scmp.eq.s32.totalorder %s14, 0
    %p103 = por %p101, %p102
    %p104 = scmp.ne.s32.totalorder %s90, %s91
    %p105 = scmp.eq.s32.totalorder %s15, 7
    %p106 = por %p104, %p105
    %p108 = scmp.ne.s32.totalorder %s91, %s107
    %p109 = scmp.eq.s32.totalorder %s15, 0
    %p110 = por %p108, %p109
    %p111 = scmp.le.s32.totalorder 1, %s9
    %p112 = scmp.lt.s32.totalorder %s9, 9
    %p113 = pnand %p111, %p112
    %p114 = pneg %p113
    // Predicated region
    $region9: #{tpu_custom_call.1} parent=5 // pred_check
      _
    $region10: #{tpu_custom_call.1} parent=5 // pred_check_branch
      %116 = sbr.rel (%p113) target = $region12
    $region11: #{tpu_custom_call.1} parent=5 // pred_region
      %s117 = ssub.s32 %s9, 1
      // Predicated region
      $region13: #{tpu_custom_call.1} parent=11 // pred_check
        %p118 = pneg %p56
      $region14: #{tpu_custom_call.1} parent=11 // pred_check_branch
        %120 = sbr.rel (%p118) target = $region16
      $region15: #{tpu_custom_call.1} parent=11 // pred_region
        _
      $region16: #{tpu_custom_call.1} parent=11 // pred_fallthru
        _
      // Predicated region
      $region17: #{tpu_custom_call.1} parent=11 // pred_check
        %p121 = pneg %p77
      $region18: #{tpu_custom_call.1} parent=11 // pred_check_branch
        %123 = sbr.rel (%p121) target = $region20
      $region19: #{tpu_custom_call.1} parent=11 // pred_region
        _
      $region20: #{tpu_custom_call.1} parent=11 // pred_fallthru
        _
    $region12: #{tpu_custom_call.1} parent=5 // pred_fallthru
      _
    %p124 = scmp.lt.s32.totalorder %s9, 8
    // Predicated region
    $region21: #{tpu_custom_call.1} parent=5 // pred_check
      %p125 = pneg %p124
    $region22: #{tpu_custom_call.1} parent=5 // pred_check_branch
      %127 = sbr.rel (%p125) target = $region24
    $region23: #{tpu_custom_call.1} parent=5 // pred_region
      // Predicated region
      $region25: #{tpu_custom_call.1} parent=23 // pred_check
        %p128 = pneg %p29
      $region26: #{tpu_custom_call.1} parent=23 // pred_check_branch
        %130 = sbr.rel (%p128) target = $region28
      $region27: #{tpu_custom_call.1} parent=23 // pred_region
        %s131 = smul.u32 2, %s9
        %p132 = scmp.lt.s32.totalorder %s131, 15
        %s133 = scalar_select %p132, %s131, 15
        %s134 = smul.addr %s133, 8
        %s135 = scalar_lea.vmem %s0, %s134
        %s136 = smul.u32 2, %s9
      $region28: #{tpu_custom_call.1} parent=23 // pred_fallthru
        _
    $region24: #{tpu_custom_call.1} parent=5 // pred_fallthru
      _
    %p137 = scmp.le.s32.totalorder 1, %s9
    %p138 = scmp.lt.s32.totalorder %s9, 9
    %p139 = pnand %p137, %p138
    %p140 = pneg %p139
    // Predicated region
    $region29: #{tpu_custom_call.1} parent=5 // pred_check
      _
    $region30: #{tpu_custom_call.1} parent=5 // pred_check_branch
      %142 = sbr.rel (%p139) target = $region32
    $region31: #{tpu_custom_call.1} parent=5 // pred_region
      %s143 = ssub.s32 %s9, 1
      %s144 = smul.u32 2, %s14
      %p145 = scmp.lt.s32.totalorder %s144, 15
      %s146 = scalar_select %p145, %s144, 15
      %s147 = smul.addr %s146, 8
      %s148 = scalar_lea.vmem %s0, %s147
      %p149 = pneg %p35
      %p150 = pneg %p32
      %p151 = pneg %p56
      %p152 = pneg %p53
      %p153 = pneg %p77
      %p154 = pneg %p74
      %p155 = pneg %p103
      %p156 = pneg %p100
      %s157 = smul.u32 2, %s14
      %p158 = scmp.lt.s32.totalorder %s157, 15
      %s159 = scalar_select %p158, %s157, 15
      %s160 = smul.addr %s159, 8
      %s161 = scalar_lea.vmem %s3, %s160
      %s162 = smul.u32 2, %s14
      %p163 = scmp.lt.s32.totalorder %s162, 15
      %s164 = scalar_select %p163, %s162, 15
      %s165 = smul.addr %s164, 8
      %s166 = scalar_lea.vmem %s0, %s165
      %s167 = smul.u32 2, %s14
      %s168 = smul.u32 2, %s14
      %p169 = scmp.lt.s32.totalorder %s168, 15
      %s170 = scalar_select %p169, %s168, 15
      %s171 = smul.addr %s170, 8
      %s172 = scalar_lea.vmem %s3, %s171
      %s173 = smul.u32 2, %s14
      %v174 = vld [vmem:[%s166] sm:$0xff]
      %v175 = vld [vmem:[%s166 + $0x8] sm:$0xff]
      %v176 = vld [vmem:[%s1] sm:$0xff]
      %v177 = vld [vmem:[%s1 + $0x8] sm:$0xff]
      %v178 = vld [vmem:[%s1 + $0x10] sm:$0xff]
      %v179 = vld [vmem:[%s1 + $0x18] sm:$0xff]
      %v180 = vld [vmem:[%s1 + $0x20] sm:$0xff]
      %vm181 = vcmask 326656
      %v183 = vsel %vm181, %v174, 0
      %v186 = vsel %vm181, %v175, 0
      %188 = vmatprep.subr.mxu0 0.0
      %189 = vmatpush1.msra.mxu0 0.0
      %190 = vmatprep.subr.mxu0 0.0
      %191 = vmatpush1.msra.mxu0 0.0
      %192 = vmatprep.subr.mxu0 0.0
      %193 = vmatpush1.msra.mxu0 0.0
      %194 = vmatprep.subr.mxu0 0.0
      %195 = vmatpush1.msra.mxu0 0.0
      %196 = vmatprep.subr.mxu0 0.0
      %197 = vmatpush1.msra.mxu0 0.0
      %198 = vmatprep.subr.mxu0 0.0
      %199 = vmatpush1.msra.mxu0 0.0
      %200 = vmatprep.subr.mxu0 0.0
      %201 = vmatpush1.msra.mxu0 0.0
      %202 = vmatprep.subr.mxu0 0.0
      %203 = vmatpush1.msra.mxu0 0.0
      %204 = vmatprep.subr.mxu0 0.0
      %205 = vmatpush1.msra.mxu0 0.0
      %206 = vmatprep.subr.mxu0 0.0
      %207 = vmatpush1.msra.mxu0 0.0
      %208 = vmatprep.subr.mxu0 0.0
      %209 = vmatpush1.msra.mxu0 0.0
      %210 = vmatprep.subr.mxu0 0.0
      %211 = vmatpush1.msra.mxu0 %v180
      %212 = vmatprep.subr.mxu0 0.0
      %213 = vmatpush1.msra.mxu0 %v179
      %214 = vmatprep.subr.mxu0 0.0
      %215 = vmatpush1.msra.mxu0 %v178
      %216 = vmatprep.subr.mxu0 0.0
      %217 = vmatpush1.msra.mxu0 %v177
      %218 = vmatprep.subr.mxu0 0.0
      %219 = vmatpush1.msra.mxu0 %v176
      %220 = vmatprep.subr.mxu0 0.0
      %221 = vmatpush2.msra.mxu0 0.0
      %222 = vmatprep.subr.mxu0 0.0
      %223 = vmatpush2.msra.mxu0 0.0
      %224 = vmatprep.subr.mxu0 0.0
      %225 = vmatpush2.msra.mxu0 0.0
      %226 = vmatprep.subr.mxu0 0.0
      %227 = vmatpush2.msra.mxu0 0.0
      %228 = vmatprep.subr.mxu0 0.0
      %229 = vmatpush2.msra.mxu0 0.0
      %230 = vmatprep.subr.mxu0 0.0
      %231 = vmatpush2.msra.mxu0 0.0
      %232 = vmatprep.subr.mxu0 0.0
      %233 = vmatpush2.msra.mxu0 0.0
      %234 = vmatprep.subr.mxu0 0.0
      %235 = vmatpush2.msra.mxu0 0.0
      %236 = vmatprep.subr.mxu0 0.0
      %237 = vmatpush2.msra.mxu0 0.0
      %238 = vmatprep.subr.mxu0 0.0
      %239 = vmatpush2.msra.mxu0 0.0
      %240 = vmatprep.subr.mxu0 0.0
      %241 = vmatpush2.msra.mxu0 0.0
      %242 = vmatprep.subr.mxu0 0.0
      %243 = vmatpush2.msra.mxu0 0.0
      %244 = vmatprep.subr.mxu0 0.0
      %245 = vmatpush2.msra.mxu0 0.0
      %246 = vmatprep.subr.mxu0 0.0
      %247 = vmatpush2.msra.mxu0 0.0
      %248 = vmatprep.subr.mxu0 0.0
      %249 = vmatpush2.msra.mxu0 0.0
      %250 = vmatprep.subr.mxu0 0.0
      %251 = vmatpush2.msra.mxu0 0.0
      %252 = vmatprep.mubr.f32.mxu0 0.0
      %253 = vmatmul.mubr.f32.gmra.mxu0 %v183
      %v254 = vpop.f32.mrf.mxu0
      %v255 = vadd.f32 0.0, %v254
      %v256 = vpop.f32.mrf.mxu0
      %257 = vmatprep.mubr.f32.mxu0 0.0
      %258 = vmatmul.mubr.f32.gmra.mxu0 %v186
      %v259 = vpop.f32.mrf.mxu0
      %v260 = vadd.f32 0.0, %v259
      %v261 = vpop.f32.mrf.mxu0
      %262 = vdwg.mxu0
      %v263 = vld [vmem:[%s2] sm:$0x1]
      %v264 = vld [vmem:[%s2 + $0x1] sm:$0x1]
      %vm265 = vcmask 261120
      %v266 = vsel %vm265, %v255, 0.0
      %267 = vadd.xlane.f32.xlu0 %v266
      %v268 = vpop.xlane.xlu0 %267
      %v269 = vsel %vm265, %v260, 0.0
      %270 = vadd.xlane.f32.xlu0 %v269
      %v271 = vpop.xlane.xlu0 %270
      %v272 = vrcp.pop 32.0
      %v273 = vmul.f32 %v268, %v272
      %v274 = vmul.f32 %v271, %v272
      %v275 = vsub.f32 %v255, %v273
      %v276 = vsub.f32 %v260, %v274
      %v277 = vmul.f32 %v275, %v275
      %v278 = vmul.f32 %v276, %v276
      %v279 = vsel %vm265, %v277, 0.0
      %280 = vadd.xlane.f32.xlu0 %v279
      %v281 = vpop.xlane.xlu0 %280
      %v282 = vsel %vm265, %v278, 0.0
      %283 = vadd.xlane.f32.xlu0 %v282
      %v284 = vpop.xlane.xlu0 %283
      %v285 = vmul.f32 %v281, %v272
      %v286 = vmul.f32 %v284, %v272
      %v287 = vadd.f32 %v285, 1e-06
      %v288 = vadd.f32 %v286, 1e-06
      %v289 = vrsqrt.pop %v287
      %v290 = vrsqrt.pop %v288
      %v291 = vmul.f32 %v275, %v289
      %v292 = vmul.f32 %v276, %v290
      %v293 = vlaneseq
      %v294 = vshrl.u32 %v293, 7
      %v295 = vsub.s32 0, %v294
      %v296 = vrot.slane %v263, %v295
      %v297 = vmul.f32 %v291, %v296
      %v298 = vmul.f32 %v292, %v296
      %v299 = vlaneseq
      %v300 = vshrl.u32 %v299, 7
      %v301 = vsub.s32 0, %v300
      %v302 = vrot.slane %v264, %v301
      %v303 = vadd.f32 %v297, %v302
      %v304 = vadd.f32 %v298, %v302
      %v305 = vand.u32 2147483647, %v255
      %vm306 = vcmp.le.f32.partialorder %v305, 0.7853982
      %vm307 = vcmp.lt.s32.totalorder %v255, 0
      %v308 = vand.u32 %v255, 2139095040
      %v309 = vshrl.u32 %v308, 23
      %v310 = vsub.s32 %v309, 127
      %v311 = vand.u32 2147483647, %v255
      %v312 = vand.u32 %v311, 8388607
      %v313 = vor.u32 %v312, 8388608
      %v314 = vsub.s32 0, %v313
      %v315 = vadd.s32 %v310, 1
      %vm316 = vcmp.gt.s32.totalorder %v315, 0
      %v317 = vsel %vm316, %v315, 0
      %v318 = vshrl.u32 %v317, 5
      %v319 = vand.u32 %v317, 31
      %v320 = vsub.s32 32, %v319
      %v321 = vshrl.u32 683565275, %v320
      %v322 = vshll.u32 683565275, %v319
      %v323 = vshrl.u32 2475754826, %v320
      %v324 = vor.u32 %v322, %v323
      %v325 = vshll.u32 2475754826, %v319
      %v326 = vshrl.u32 2131351028, %v320
      %v327 = vor.u32 %v325, %v326
      %v328 = vshll.u32 2131351028, %v319
      %v329 = vshrl.u32 2102212464, %v320
      %v330 = vor.u32 %v328, %v329
      %v331 = vshll.u32 2102212464, %v319
      %v332 = vshrl.u32 920167782, %v320
      %v333 = vor.u32 %v331, %v332
      %v334 = vshll.u32 920167782, %v319
      %v335 = vshrl.u32 1326507024, %v320
      %v336 = vor.u32 %v334, %v335
      %vm337 = vcmp.lt.s32.totalorder %v318, 1
      %vm338 = vcmp.lt.s32.totalorder %v318, 2
      %vm339 = vcmp.lt.s32.totalorder %v318, 3
      %vm340 = vcmp.lt.s32.totalorder %v318, 4
      %v341 = vsel %vm337, %v321, %v324
      %v342 = vsel %vm340, %v330, 2102212464
      %v343 = vsel %vm339, %v327, %v342
      %v344 = vsel %vm338, %v341, %v343
      %v345 = vsel %vm337, %v324, %v327
      %v346 = vsel %vm340, %v333, 920167782
      %v347 = vsel %vm339, %v330, %v346
      %v348 = vsel %vm338, %v345, %v347
      %v349 = vsel %vm337, %v327, %v330
      %v350 = vsel %vm340, %v336, 1326507024
      %v351 = vsel %vm339, %v333, %v350
      %v352 = vsel %vm338, %v349, %v351
      %v353 = vshll.u32 %v313, 8
      %v354 = vmul.u32.u64.compose %v353, %v352
      %v355 = vextract.low.u32 %v354
      %v356 = vextract.high.u32 %v354
      %v357 = vmul.u32.u64.compose %v353, %v348
      %v358 = vextract.low.u32 %v357
      %v359 = vextract.high.u32 %v357
      %v360 = vmul.u32 %v353, %v344
      %v361 = vadd.s32 %v356, %v358
      %vm362 = vc.u32 %v356, %v358
      %v363 = vadd.s32 %v359, 1
      %v364 = vsel %vm362, %v363, %v359
      %v365 = vadd.s32 %v360, %v364
      %v366 = vadd.s32 %v365, 536870912
      %v367 = vshrl.u32 %v366, 30
      %v368 = vshll.u32 %v367, 30
      %v369 = vsub.s32 %v365, %v368
      %vm370 = vcmp.lt.s32.totalorder %v369, 0
      %v371 = vsub.s32 0, %v369
      %v372 = vsel %vm370, %v371, %v369
      %v373 = vclz %v372
      %v374 = vsub.s32 %v373, 2
      %vm375 = vcmp.gt.s32.totalorder 0, %v374
      %v376 = vsel %vm375, 0, %v374
      %v377 = vsub.s32 32, %v376
      %v378 = vshll.u32 %v369, %v376
      %v379 = vshrl.u32 %v361, %v377
      %v380 = vor.u32 %v378, %v379
      %v381 = vsub.s32 4294967266, %v376
      %v382 = vadd.s32 %v381, 127
      %v383 = vshll.u32 %v382, 23
      %v384 = vor.u32 4788187, %v383
      %v385 = vand.u32 2147483647, %v384
      %v387 = vcvt.s32.f32 %v380
      %v388 = vmul.f32 %v387, %v385
      %v389 = vxor.u32 %v388, 2147483648
      %v390 = vsel %vm307, %v389, %v388
      %v391 = vsub.s32 4, %v367
      %v392 = vsel %vm307, %v391, %v367
      %v393 = vsel %vm306, %v255, %v390
      %v394 = vsel %vm306, 0, %v392
      %v395 = vcosq.f32.pop %v393
      %v396 = vsinq.f32.pop %v393
      %vm397 = vweird.f32 %v255
      %v398 = vand.u32 %v394, 3
      %vm399 = vcmp.lt.s32.totalorder %v398, 2
      %vm400 = vcmp.eq.s32.totalorder %v398, 0
      %v401 = vxor.u32 %v396, 2147483648
      %v402 = vsel %vm400, %v395, %v401
      %vm403 = vcmp.eq.s32.totalorder %v398, 2
      %v404 = vxor.u32 %v395, 2147483648
      %v405 = vsel %vm403, %v404, %v396
      %v406 = vsel %vm399, %v402, %v405
      %v407 = vsel %vm397, nan, %v406
      %v408 = vand.u32 2147483647, %v260
      %vm409 = vcmp.le.f32.partialorder %v408, 0.7853982
      %vm410 = vcmp.lt.s32.totalorder %v260, 0
      %v411 = vand.u32 %v260, 2139095040
      %v412 = vshrl.u32 %v411, 23
      %v413 = vsub.s32 %v412, 127
      %v414 = vand.u32 2147483647, %v260
      %v415 = vand.u32 %v414, 8388607
      %v416 = vor.u32 %v415, 8388608
      %v417 = vsub.s32 0, %v416
      %v418 = vadd.s32 %v413, 1
      %vm419 = vcmp.gt.s32.totalorder %v418, 0
      %v420 = vsel %vm419, %v418, 0
      %v421 = vshrl.u32 %v420, 5
      %v422 = vand.u32 %v420, 31
      %v423 = vsub.s32 32, %v422
      %v424 = vshrl.u32 683565275, %v423
      %v425 = vshll.u32 683565275, %v422
      %v426 = vshrl.u32 2475754826, %v423
      %v427 = vor.u32 %v425, %v426
      %v428 = vshll.u32 2475754826, %v422
      %v429 = vshrl.u32 2131351028, %v423
      %v430 = vor.u32 %v428, %v429
      %v431 = vshll.u32 2131351028, %v422
      %v432 = vshrl.u32 2102212464, %v423
      %v433 = vor.u32 %v431, %v432
      %v434 = vshll.u32 2102212464, %v422
      %v435 = vshrl.u32 920167782, %v423
      %v436 = vor.u32 %v434, %v435
      %v437 = vshll.u32 920167782, %v422
      %v438 = vshrl.u32 1326507024, %v423
      %v439 = vor.u32 %v437, %v438
      %vm440 = vcmp.lt.s32.totalorder %v421, 1
      %vm441 = vcmp.lt.s32.totalorder %v421, 2
      %vm442 = vcmp.lt.s32.totalorder %v421, 3
      %vm443 = vcmp.lt.s32.totalorder %v421, 4
      %v444 = vsel %vm440, %v424, %v427
      %v445 = vsel %vm443, %v433, 2102212464
      %v446 = vsel %vm442, %v430, %v445
      %v447 = vsel %vm441, %v444, %v446
      %v448 = vsel %vm440, %v427, %v430
      %v449 = vsel %vm443, %v436, 920167782
      %v450 = vsel %vm442, %v433, %v449
      %v451 = vsel %vm441, %v448, %v450
      %v452 = vsel %vm440, %v430, %v433
      %v453 = vsel %vm443, %v439, 1326507024
      %v454 = vsel %vm442, %v436, %v453
      %v455 = vsel %vm441, %v452, %v454
      %v456 = vshll.u32 %v416, 8
      %v457 = vmul.u32.u64.compose %v456, %v455
      %v458 = vextract.low.u32 %v457
      %v459 = vextract.high.u32 %v457
      %v460 = vmul.u32.u64.compose %v456, %v451
      %v461 = vextract.low.u32 %v460
      %v462 = vextract.high.u32 %v460
      %v463 = vmul.u32 %v456, %v447
      %v464 = vadd.s32 %v459, %v461
      %vm465 = vc.u32 %v459, %v461
      %v466 = vadd.s32 %v462, 1
      %v467 = vsel %vm465, %v466, %v462
      %v468 = vadd.s32 %v463, %v467
      %v469 = vadd.s32 %v468, 536870912
      %v470 = vshrl.u32 %v469, 30
      %v471 = vshll.u32 %v470, 30
      %v472 = vsub.s32 %v468, %v471
      %vm473 = vcmp.lt.s32.totalorder %v472, 0
      %v474 = vsub.s32 0, %v472
      %v475 = vsel %vm473, %v474, %v472
      %v476 = vclz %v475
      %v477 = vsub.s32 %v476, 2
      %vm478 = vcmp.gt.s32.totalorder 0, %v477
      %v479 = vsel %vm478, 0, %v477
      %v480 = vsub.s32 32, %v479
      %v481 = vshll.u32 %v472, %v479
      %v482 = vshrl.u32 %v464, %v480
      %v483 = vor.u32 %v481, %v482
      %v484 = vsub.s32 4294967266, %v479
      %v485 = vadd.s32 %v484, 127
      %v486 = vshll.u32 %v485, 23
      %v487 = vor.u32 4788187, %v486
      %v488 = vand.u32 2147483647, %v487
      %v490 = vcvt.s32.f32 %v483
      %v491 = vmul.f32 %v490, %v488
      %v492 = vxor.u32 %v491, 2147483648
      %v493 = vsel %vm410, %v492, %v491
      %v494 = vsub.s32 4, %v470
      %v495 = vsel %vm410, %v494, %v470
      %v496 = vsel %vm409, %v260, %v493
      %v497 = vsel %vm409, 0, %v495
      %v498 = vcosq.f32.pop %v496
      %v499 = vsinq.f32.pop %v496
      %vm500 = vweird.f32 %v260
      %v501 = vand.u32 %v497, 3
      %vm502 = vcmp.lt.s32.totalorder %v501, 2
      %vm503 = vcmp.eq.s32.totalorder %v501, 0
      %v504 = vxor.u32 %v499, 2147483648
      %v505 = vsel %vm503, %v498, %v504
      %vm506 = vcmp.eq.s32.totalorder %v501, 2
      %v507 = vxor.u32 %v498, 2147483648
      %v508 = vsel %vm506, %v507, %v499
      %v509 = vsel %vm502, %v505, %v508
      %v510 = vsel %vm500, nan, %v509
      %513 = vrot.lane.b32.xlu0 %v407, 96
      %v514 = vpop.permute.xlu0 %513
      %515 = vrot.lane.b32.xlu0 %v510, 96
      %v516 = vpop.permute.xlu0 %515
      %v519 = vmul.f32 %v303, %v514
      %v520 = vmul.f32 %v304, %v516
      %v521 = vand.u32 2147483647, %v255
      %vm522 = vcmp.le.f32.partialorder %v521, 0.7853982
      %vm523 = vcmp.lt.s32.totalorder %v255, 0
      %v524 = vand.u32 %v255, 2139095040
      %v525 = vshrl.u32 %v524, 23
      %v526 = vsub.s32 %v525, 127
      %v527 = vand.u32 2147483647, %v255
      %v528 = vand.u32 %v527, 8388607
      %v529 = vor.u32 %v528, 8388608
      %v530 = vsub.s32 0, %v529
      %v531 = vadd.s32 %v526, 1
      %vm532 = vcmp.gt.s32.totalorder %v531, 0
      %v533 = vsel %vm532, %v531, 0
      %v534 = vshrl.u32 %v533, 5
      %v535 = vand.u32 %v533, 31
      %v536 = vsub.s32 32, %v535
      %v537 = vshrl.u32 683565275, %v536
      %v538 = vshll.u32 683565275, %v535
      %v539 = vshrl.u32 2475754826, %v536
      %v540 = vor.u32 %v538, %v539
      %v541 = vshll.u32 2475754826, %v535
      %v542 = vshrl.u32 2131351028, %v536
      %v543 = vor.u32 %v541, %v542
      %v544 = vshll.u32 2131351028, %v535
      %v545 = vshrl.u32 2102212464, %v536
      %v546 = vor.u32 %v544, %v545
      %v547 = vshll.u32 2102212464, %v535
      %v548 = vshrl.u32 920167782, %v536
      %v549 = vor.u32 %v547, %v548
      %v550 = vshll.u32 920167782, %v535
      %v551 = vshrl.u32 1326507024, %v536
      %v552 = vor.u32 %v550, %v551
      %vm553 = vcmp.lt.s32.totalorder %v534, 1
      %vm554 = vcmp.lt.s32.totalorder %v534, 2
      %vm555 = vcmp.lt.s32.totalorder %v534, 3
      %vm556 = vcmp.lt.s32.totalorder %v534, 4
      %v557 = vsel %vm553, %v537, %v540
      %v558 = vsel %vm556, %v546, 2102212464
      %v559 = vsel %vm555, %v543, %v558
      %v560 = vsel %vm554, %v557, %v559
      %v561 = vsel %vm553, %v540, %v543
      %v562 = vsel %vm556, %v549, 920167782
      %v563 = vsel %vm555, %v546, %v562
      %v564 = vsel %vm554, %v561, %v563
      %v565 = vsel %vm553, %v543, %v546
      %v566 = vsel %vm556, %v552, 1326507024
      %v567 = vsel %vm555, %v549, %v566
      %v568 = vsel %vm554, %v565, %v567
      %v569 = vshll.u32 %v529, 8
      %v570 = vmul.u32.u64.compose %v569, %v568
      %v571 = vextract.low.u32 %v570
      %v572 = vextract.high.u32 %v570
      %v573 = vmul.u32.u64.compose %v569, %v564
      %v574 = vextract.low.u32 %v573
      %v575 = vextract.high.u32 %v573
      %v576 = vmul.u32 %v569, %v560
      %v577 = vadd.s32 %v572, %v574
      %vm578 = vc.u32 %v572, %v574
      %v579 = vadd.s32 %v575, 1
      %v580 = vsel %vm578, %v579, %v575
      %v581 = vadd.s32 %v576, %v580
      %v582 = vadd.s32 %v581, 536870912
      %v583 = vshrl.u32 %v582, 30
      %v584 = vshll.u32 %v583, 30
      %v585 = vsub.s32 %v581, %v584
      %vm586 = vcmp.lt.s32.totalorder %v585, 0
      %v587 = vsub.s32 0, %v585
      %v588 = vsel %vm586, %v587, %v585
      %v589 = vclz %v588
      %v590 = vsub.s32 %v589, 2
      %vm591 = vcmp.gt.s32.totalorder 0, %v590
      %v592 = vsel %vm591, 0, %v590
      %v593 = vsub.s32 32, %v592
      %v594 = vshll.u32 %v585, %v592
      %v595 = vshrl.u32 %v577, %v593
      %v596 = vor.u32 %v594, %v595
      %v597 = vsub.s32 4294967266, %v592
      %v598 = vadd.s32 %v597, 127
      %v599 = vshll.u32 %v598, 23
      %v600 = vor.u32 4788187, %v599
      %v601 = vand.u32 2147483647, %v600
      %v603 = vcvt.s32.f32 %v596
      %v604 = vmul.f32 %v603, %v601
      %v605 = vxor.u32 %v604, 2147483648
      %v606 = vsel %vm523, %v605, %v604
      %v607 = vsub.s32 4, %v583
      %v608 = vsel %vm523, %v607, %v583
      %v609 = vsel %vm522, %v255, %v606
      %v610 = vsel %vm522, 0, %v608
      %v611 = vcosq.f32.pop %v609
      %v612 = vsinq.f32.pop %v609
      %vm613 = vweird.f32 %v255
      %v614 = vadd.s32 %v610, 3
      %v615 = vand.u32 %v614, 3
      %vm616 = vcmp.lt.s32.totalorder %v615, 2
      %vm617 = vcmp.eq.s32.totalorder %v615, 0
      %v618 = vxor.u32 %v612, 2147483648
      %v619 = vsel %vm617, %v611, %v618
      %vm620 = vcmp.eq.s32.totalorder %v615, 2
      %v621 = vxor.u32 %v611, 2147483648
      %v622 = vsel %vm620, %v621, %v612
      %v623 = vsel %vm616, %v619, %v622
      %v624 = vsel %vm613, nan, %v623
      %v625 = vand.u32 2147483647, %v260
      %vm626 = vcmp.le.f32.partialorder %v625, 0.7853982
      %vm627 = vcmp.lt.s32.totalorder %v260, 0
      %v628 = vand.u32 %v260, 2139095040
      %v629 = vshrl.u32 %v628, 23
      %v630 = vsub.s32 %v629, 127
      %v631 = vand.u32 2147483647, %v260
      %v632 = vand.u32 %v631, 8388607
      %v633 = vor.u32 %v632, 8388608
      %v634 = vsub.s32 0, %v633
      %v635 = vadd.s32 %v630, 1
      %vm636 = vcmp.gt.s32.totalorder %v635, 0
      %v637 = vsel %vm636, %v635, 0
      %v638 = vshrl.u32 %v637, 5
      %v639 = vand.u32 %v637, 31
      %v640 = vsub.s32 32, %v639
      %v641 = vshrl.u32 683565275, %v640
      %v642 = vshll.u32 683565275, %v639
      %v643 = vshrl.u32 2475754826, %v640
      %v644 = vor.u32 %v642, %v643
      %v645 = vshll.u32 2475754826, %v639
      %v646 = vshrl.u32 2131351028, %v640
      %v647 = vor.u32 %v645, %v646
      %v648 = vshll.u32 2131351028, %v639
      %v649 = vshrl.u32 2102212464, %v640
      %v650 = vor.u32 %v648, %v649
      %v651 = vshll.u32 2102212464, %v639
      %v652 = vshrl.u32 920167782, %v640
      %v653 = vor.u32 %v651, %v652
      %v654 = vshll.u32 920167782, %v639
      %v655 = vshrl.u32 1326507024, %v640
      %v656 = vor.u32 %v654, %v655
      %vm657 = vcmp.lt.s32.totalorder %v638, 1
      %vm658 = vcmp.lt.s32.totalorder %v638, 2
      %vm659 = vcmp.lt.s32.totalorder %v638, 3
      %vm660 = vcmp.lt.s32.totalorder %v638, 4
      %v661 = vsel %vm657, %v641, %v644
      %v662 = vsel %vm660, %v650, 2102212464
      %v663 = vsel %vm659, %v647, %v662
      %v664 = vsel %vm658, %v661, %v663
      %v665 = vsel %vm657, %v644, %v647
      %v666 = vsel %vm660, %v653, 920167782
      %v667 = vsel %vm659, %v650, %v666
      %v668 = vsel %vm658, %v665, %v667
      %v669 = vsel %vm657, %v647, %v650
      %v670 = vsel %vm660, %v656, 1326507024
      %v671 = vsel %vm659, %v653, %v670
      %v672 = vsel %vm658, %v669, %v671
      %v673 = vshll.u32 %v633, 8
      %v674 = vmul.u32.u64.compose %v673, %v672
      %v675 = vextract.low.u32 %v674
      %v676 = vextract.high.u32 %v674
      %v677 = vmul.u32.u64.compose %v673, %v668
      %v678 = vextract.low.u32 %v677
      %v679 = vextract.high.u32 %v677
      %v680 = vmul.u32 %v673, %v664
      %v681 = vadd.s32 %v676, %v678
      %vm682 = vc.u32 %v676, %v678
      %v683 = vadd.s32 %v679, 1
      %v684 = vsel %vm682, %v683, %v679
      %v685 = vadd.s32 %v680, %v684
      %v686 = vadd.s32 %v685, 536870912
      %v687 = vshrl.u32 %v686, 30
      %v688 = vshll.u32 %v687, 30
      %v689 = vsub.s32 %v685, %v688
      %vm690 = vcmp.lt.s32.totalorder %v689, 0
      %v691 = vsub.s32 0, %v689
      %v692 = vsel %vm690, %v691, %v689
      %v693 = vclz %v692
      %v694 = vsub.s32 %v693, 2
      %vm695 = vcmp.gt.s32.totalorder 0, %v694
      %v696 = vsel %vm695, 0, %v694
      %v697 = vsub.s32 32, %v696
      %v698 = vshll.u32 %v689, %v696
      %v699 = vshrl.u32 %v681, %v697
      %v700 = vor.u32 %v698, %v699
      %v701 = vsub.s32 4294967266, %v696
      %v702 = vadd.s32 %v701, 127
      %v703 = vshll.u32 %v702, 23
      %v704 = vor.u32 4788187, %v703
      %v705 = vand.u32 2147483647, %v704
      %v707 = vcvt.s32.f32 %v700
      %v708 = vmul.f32 %v707, %v705
      %v709 = vxor.u32 %v708, 2147483648
      %v710 = vsel %vm627, %v709, %v708
      %v711 = vsub.s32 4, %v687
      %v712 = vsel %vm627, %v711, %v687
      %v713 = vsel %vm626, %v260, %v710
      %v714 = vsel %vm626, 0, %v712
      %v715 = vcosq.f32.pop %v713
      %v716 = vsinq.f32.pop %v713
      %vm717 = vweird.f32 %v260
      %v718 = vadd.s32 %v714, 3
      %v719 = vand.u32 %v718, 3
      %vm720 = vcmp.lt.s32.totalorder %v719, 2
      %vm721 = vcmp.eq.s32.totalorder %v719, 0
      %v722 = vxor.u32 %v716, 2147483648
      %v723 = vsel %vm721, %v715, %v722
      %vm724 = vcmp.eq.s32.totalorder %v719, 2
      %v725 = vxor.u32 %v715, 2147483648
      %v726 = vsel %vm724, %v725, %v716
      %v727 = vsel %vm720, %v723, %v726
      %v728 = vsel %vm717, nan, %v727
      %731 = vrot.lane.b32.xlu0 %v624, 96
      %v732 = vpop.permute.xlu0 %731
      %733 = vrot.lane.b32.xlu0 %v728, 96
      %v734 = vpop.permute.xlu0 %733
      %v737 = vmul.f32 %v303, %v732
      %v738 = vmul.f32 %v304, %v734
      %741 = vrot.lane.b32.xlu0 %v737, 32
      %v742 = vpop.permute.xlu0 %741
      %743 = vrot.lane.b32.xlu0 %v738, 32
      %v744 = vpop.permute.xlu0 %743
      %v747 = vsel %vm265, %v519, %v742
      %v748 = vsel %vm265, %v520, %v744
      %vm749 = vcmask 523264
      %750 = vst.msk [vmem:[%s172] sm:$0xff] %vm749, %v747
      %751 = vst.msk [vmem:[%s172 + $0x8] sm:$0xff] %vm749, %v748
      %s752 = smul.u32 2, %s14
      %p753 = scmp.lt.s32.totalorder %s752, 15
      %s754 = scalar_select %p753, %s752, 15
      %s755 = smul.addr %s754, 8
      %s756 = scalar_lea.vmem %s3, %s755
      // Predicated region
      $region33: #{tpu_custom_call.1} parent=31 // pred_check
        %p757 = pneg %p100
      $region34: #{tpu_custom_call.1} parent=31 // pred_check_branch
        %759 = sbr.rel (%p757) target = $region36
      $region35: #{tpu_custom_call.1} parent=31 // pred_region
        %s760 = smul.u32 2, %s14
      $region36: #{tpu_custom_call.1} parent=31 // pred_fallthru
        _
    $region32: #{tpu_custom_call.1} parent=5 // pred_fallthru
      _
    %p761 = scmp.le.s32.totalorder 2, %s9
    // Predicated region
    $region37: #{tpu_custom_call.1} parent=5 // pred_check
      %p762 = pneg %p761
    $region38: #{tpu_custom_call.1} parent=5 // pred_check_branch
      %764 = sbr.rel (%p762) target = $region40
    $region39: #{tpu_custom_call.1} parent=5 // pred_region
      %s765 = ssub.s32 %s9, 2
      // Predicated region
      $region41: #{tpu_custom_call.1} parent=39 // pred_check
        %p766 = pneg %p106
      $region42: #{tpu_custom_call.1} parent=39 // pred_check_branch
        %768 = sbr.rel (%p766) target = $region44
      $region43: #{tpu_custom_call.1} parent=39 // pred_region
        %s769 = smul.u32 2, %s15
        %p770 = scmp.lt.s32.totalorder %s769, 15
        %s771 = scalar_select %p770, %s769, 15
        %s772 = smul.addr %s771, 8
        %s773 = scalar_lea.vmem %s3, %s772
      $region44: #{tpu_custom_call.1} parent=39 // pred_fallthru
        _
    $region40: #{tpu_custom_call.1} parent=5 // pred_fallthru
      _
  $region6: #{tpu_custom_call.1} parent=0 // loop_footer
    %s13 = sadd.s32 1, %s9
  $region7: #{tpu_custom_call.1} parent=0 // loop_footer_branch
    %8 = sbr.rel target = $region3
  $region8: #{tpu_custom_call.1} parent=0 // loop_exit
    _

</llo_original>
